<compile_context>
chip_gen: v6e
topology: v6e:2x2x1
jax: 0.10.0
libtpu: 0.0.40
codegen_flags: <defaults>
</compile_context>

<pallas_src>
import functools

import jax
import jax.numpy as jnp
from jax.experimental import pallas as pl
from jax.experimental.pallas import tpu as pltpu


def _ssam_kernel(temp_ref, x_ref, coords_ref, out_ref):
    # temp_ref:   (1,)      scalar temperature in SMEM
    # x_ref:      (TR, HW)  one tile of flattened feature maps (native dtype)
    # coords_ref: (HW, 3)   columns = [x_coord, y_coord, 1.0]
    # out_ref:    (TR, 2)   expected (x, y) per map
    inv_t = 1.0 / temp_ref[0]
    x = x_ref[...].astype(jnp.float32) * inv_t
    m = jnp.max(x, axis=-1, keepdims=True)
    e = jnp.exp(x - m)
    # Fused contraction on the MXU: one pass yields [sum(e*x), sum(e*y), sum(e)].
    raw = jnp.dot(e, coords_ref[...], preferred_element_type=jnp.float32)  # (TR, 3)
    inv_denom = pl.reciprocal(raw[:, 2:3], approx=True)                    # (TR, 1)
    out_ref[...] = (raw[:, 0:2] * inv_denom).astype(out_ref.dtype)


def _make_coord_table(h, w, normalise):
    """(H*W, 3) table: col 0 = x (column index), col 1 = y (row index), col 2 = 1."""
    x_range = jnp.arange(w, dtype=jnp.float32)
    y_range = jnp.arange(h, dtype=jnp.float32)
    if normalise:
        x_range = x_range / (w - 1) * 2.0 - 1.0
        y_range = y_range / (h - 1) * 2.0 - 1.0
    image_x = jnp.broadcast_to(x_range[None, :], (h, w)).reshape(h * w, 1)
    image_y = jnp.broadcast_to(y_range[:, None], (h, w)).reshape(h * w, 1)
    ones = jnp.ones((h * w, 1), dtype=jnp.float32)
    return jnp.concatenate([image_x, image_y, ones], axis=-1)  # (HW, 3)


def _choose_row_tile(nc, hw, itemsize):
    """Largest row tile that fits the VMEM budget, keeping a few grid steps."""
    per_row_bytes = max(1, hw * itemsize)
    budget = 6 * 1024 * 1024                      # per pipeline buffer (x is double-buffered)
    rt = budget // per_row_bytes
    # Keep ~>=8 grid steps when the problem allows it (megacore sharding + pipelining).
    rt = min(rt, -(-nc // 8))
    rt = max(rt, 8)
    # Align rows for clean MXU / sublane tiling.
    if rt >= 256:
        rt = (rt // 256) * 256
    elif rt >= 128:
        rt = (rt // 128) * 128
    else:
        rt = ((rt + 7) // 8) * 8
    # Never exceed the (sublane-rounded) number of rows.
    rt = min(rt, ((nc + 7) // 8) * 8)
    return int(rt)


@functools.partial(jax.jit, static_argnames=("normalise", "row_tile"))
def spatial_soft_argmax(x, temperature, normalise=False, row_tile=None):
    """x: (N, C, H, W) -> (N, C, 2) float32 expected coordinates."""
    n, c, h, w = x.shape
    nc, hw = n * c, h * w
    # Native dtype, no pad, no extra HBM copy: reshape of contiguous NCHW is free.
    x_flat = x.reshape(nc, hw)

    if row_tile is None:
        row_tile = _choose_row_tile(nc, hw, x_flat.dtype.itemsize)

    coords = _make_coord_table(h, w, normalise)                 # (HW, 3) float32
    temp = jnp.asarray(temperature, dtype=jnp.float32).reshape((1,))

    grid = (pl.cdiv(nc, row_tile),)                             # ragged last block OK
    out = pl.pallas_call(
        _ssam_kernel,
        out_shape=jax.ShapeDtypeStruct((nc, 2), jnp.float32),
        grid_spec=pltpu.PrefetchScalarGridSpec(
            num_scalar_prefetch=0,
            grid=grid,
            in_specs=[
                pl.BlockSpec(memory_space=pltpu.SMEM),               # temperature
                pl.BlockSpec((row_tile, hw), lambda i: (i, 0)),      # feature maps
                pl.BlockSpec((hw, 3), lambda i: (0, 0)),             # coord table (resident)
            ],
            out_specs=pl.BlockSpec((row_tile, 2), lambda i: (i, 0)),
        ),
        compiler_params=pltpu.CompilerParams(
            dimension_semantics=("parallel",),
            # Raise the scoped VMEM limit (v5e default 16 MiB, v6e/v7x 32 MiB) so the
            # large double-buffered row tiles fit; stays under v7x's 64 MiB physical.
            vmem_limit_bytes=48 * 1024 * 1024,
        ),
    )(temp, x_flat, coords)

    # Any overhang rows of a ragged last block are dropped here.
    return out[:nc].reshape(n, c, 2)


def _reference(x, temperature, normalise):
    n, c, h, w = x.shape
    probs = jax.nn.softmax(x.reshape(n * c, h * w).astype(jnp.float32) / temperature, axis=1)
    probs = probs.reshape(n, c, h, w)
    coords = _make_coord_table(h, w, normalise)[:, :2].reshape(h, w, 2)
    return jnp.sum(probs[..., None] * coords[None, None], axis=(2, 3))


if __name__ == "__main__":
    key = jax.random.PRNGKey(0)
    N, C, H, W = 2, 4, 16, 16
    x = jax.random.normal(key, (N, C, H, W), dtype=jnp.float32)

    # Deterministic "learnt" parameter: temperature = nn.Parameter(torch.ones(1)).
    temperature = jnp.ones((1,), dtype=jnp.float32)

    ok = True
    for normalise in (False, True):
        out = spatial_soft_argmax(x, temperature, normalise=normalise)
        out = jax.block_until_ready(out)
        ref = _reference(x, temperature, normalise)
        ok &= out.shape == (N, C, 2)
        # Loose-ish tolerance: the softmax denominator uses the EUP approximate
        # reciprocal (pl.reciprocal(approx=True)).
        ok &= bool(jnp.allclose(out, ref, atol=1e-2, rtol=1e-2))

    assert ok
    print("KERNEL_OK")
</pallas_src>

<mosaic_0001>
module attributes {stable_mosaic.version = 11 : i64} {
  func.func @_ssam_kernel(%arg0: i32, %arg1: memref<1xf32, #tpu.memory_space<smem>>, %arg2: memref<8x256xf32, #tpu.memory_space<vmem>>, %arg3: memref<256x3xf32, #tpu.memory_space<vmem>>, %arg4: memref<8x2xf32, #tpu.memory_space<vmem>>) attributes {dimension_semantics = [#tpu.dimension_semantics<parallel>], iteration_bounds = array<i64: 1>, scalar_prefetch = 0 : i64, scratch_operands = 0 : i64, tpu.core_type = #tpu.core_type<tc>, window_params = [{transform_indices = @transform_0, window_bounds = array<i64: 1>}, {transform_indices = @transform_1, window_bounds = array<i64: 8, 256>}, {pipeline_mode = #tpu.pipeline_mode<synchronous>, transform_indices = @transform_2, window_bounds = array<i64: 256, 3>}, {transform_indices = @transform_3, window_bounds = array<i64: 8, 2>}]} {
    %c0 = arith.constant 0 : index
    %0 = memref.load %arg1[%c0] : memref<1xf32, #tpu.memory_space<smem>>
    %cst = arith.constant 1.000000e+00 : f32
    %1 = arith.divf %cst, %0 : f32
    %c0_0 = arith.constant 0 : index
    %c0_1 = arith.constant 0 : index
    %2 = vector.load %arg2[%c0_0, %c0_1] : memref<8x256xf32, #tpu.memory_space<vmem>>, vector<8x256xf32>
    %3 = vector.broadcast %1 : f32 to vector<8x256xf32>
    %4 = arith.mulf %2, %3 : vector<8x256xf32>
    %cst_2 = arith.constant dense<0xFF800000> : vector<8xf32>
    %5 = vector.multi_reduction <maximumf>, %4, %cst_2 [1] : vector<8x256xf32> to vector<8xf32>
    %6 = vector.shape_cast %5 : vector<8xf32> to vector<8x1xf32>
    %7 = vector.broadcast %6 : vector<8x1xf32> to vector<8x256xf32>
    %8 = arith.subf %4, %7 : vector<8x256xf32>
    %9 = math.exp %8 : vector<8x256xf32>
    %c0_3 = arith.constant 0 : index
    %c0_4 = arith.constant 0 : index
    %10 = vector.load %arg3[%c0_3, %c0_4] : memref<256x3xf32, #tpu.memory_space<vmem>>, vector<256x3xf32>
    %cst_5 = arith.constant dense<0.000000e+00> : vector<8x3xf32>
    %11 = tpu.matmul %9, %10, %cst_5 {dimension_numbers = #tpu.dot_dimension_numbers<[1], [0], [0], [1], [0, 0, 1, 1], [], []>} : vector<8x256xf32>, vector<256x3xf32>, vector<8x3xf32> -> vector<8x3xf32>
    %12 = vector.extract_strided_slice %11 {offsets = [0, 2], sizes = [8, 1], strides = [1, 1]} : vector<8x3xf32> to vector<8x1xf32>
    %13 = tpu.reciprocal %12 {approx = true} : vector<8x1xf32> -> vector<8x1xf32>
    %14 = vector.extract_strided_slice %11 {offsets = [0, 0], sizes = [8, 2], strides = [1, 1]} : vector<8x3xf32> to vector<8x2xf32>
    %15 = vector.broadcast %13 : vector<8x1xf32> to vector<8x2xf32>
    %16 = arith.mulf %14, %15 : vector<8x2xf32>
    %c0_6 = arith.constant 0 : index
    %c0_7 = arith.constant 0 : index
    %17 = vector.load %arg4[%c0_6, %c0_7] : memref<8x2xf32, #tpu.memory_space<vmem>>, vector<8x2xf32>
    tpu.vector_store %arg4[%c0_6, %c0_7], %16 {strides = array<i32>} : memref<8x2xf32, #tpu.memory_space<vmem>>, vector<8x2xf32>,
    return
  }
  func.func @transform_0(%arg0: i32) -> i32 {
    %c0_i32 = arith.constant 0 : i32
    %c0_i32_0 = arith.constant 0 : i32
    return %c0_i32 : i32
  }
  func.func @transform_1(%arg0: i32) -> (i32, i32) {
    %c0_i32 = arith.constant 0 : i32
    %c0_i32_0 = arith.constant 0 : i32
    return %arg0, %c0_i32 : i32, i32
  }
  func.func @transform_2(%arg0: i32) -> (i32, i32) {
    %c0_i32 = arith.constant 0 : i32
    %c0_i32_0 = arith.constant 0 : i32
    %c0_i32_1 = arith.constant 0 : i32
    return %c0_i32, %c0_i32_0 : i32, i32
  }
  func.func @transform_3(%arg0: i32) -> (i32, i32) {
    %c0_i32 = arith.constant 0 : i32
    %c0_i32_0 = arith.constant 0 : i32
    return %arg0, %c0_i32 : i32, i32
  }
}

</mosaic_0001>

<llo_original>
// kernel: spatial_soft_argmax.1
$region0: #{spatial_soft_argmax.1}
  #allocation0 [shape = 'u32[]', space=smem, size = 0x4, offset = 0x4, fixed_abs, tag = 'smem constant byte address 0x4 - core index']
  #allocation1 [shape = 'u32[144,128]{1,0:T(1,128)}', space=vmem, size = 0x12000, scoped, tag = 'internal scratch']
  #allocation2 [shape = 'f32[1]{0:T(128)S(6)}', space=smem, size = 0x200, scoped, tag = 'scoped memory for spatial_soft_argmax.1']
  %s0 = inlined_call_operand.<no memory space> [shape: f32[1], index: 0, kind: input, shape index: {}]
  %s1 = inlined_call_operand.vmem [shape: f32[8,256], index: 1, kind: input, shape index: {}]
  %s2 = inlined_call_operand.vmem [shape: f32[256,3], index: 2, kind: input, shape index: {}]
  %s3 = inlined_call_operand.vmem [shape: f32[8,2], index: 3, kind: output, shape index: {}]
  %s4 = sld [smem:[#allocation0]]
  $region22: #{spatial_soft_argmax.1} parent=0
    _
  %s6 = ssub.s32 1, %s4
  %s7 = scalar_select 0, %s6, %s4
  %8 = sst [smem:[#allocation2]] %s0
  // Predicated region
  $region2: #{spatial_soft_argmax.1} parent=0 // pred_check
    _
  $region3: #{spatial_soft_argmax.1} parent=0 // pred_check_branch
    %10 = sbr.rel (0) target = $region5
  $region4: #{spatial_soft_argmax.1} parent=0 // pred_region
    _
  $region5: #{spatial_soft_argmax.1} parent=0 // pred_fallthru
    _
  // Predicated region
  $region6: #{spatial_soft_argmax.1} parent=0 // pred_check
    _
  $region7: #{spatial_soft_argmax.1} parent=0 // pred_check_branch
    %12 = sbr.rel (0) target = $region9
  $region8: #{spatial_soft_argmax.1} parent=0 // pred_region
    _
  $region9: #{spatial_soft_argmax.1} parent=0 // pred_fallthru
    _
  // Predicated region
  $region10: #{spatial_soft_argmax.1} parent=0 // pred_check
    _
  $region11: #{spatial_soft_argmax.1} parent=0 // pred_check_branch
    %14 = sbr.rel (0) target = $region13
  $region12: #{spatial_soft_argmax.1} parent=0 // pred_region
    _
  $region13: #{spatial_soft_argmax.1} parent=0 // pred_fallthru
    _
  %s15 = sld [smem:[#allocation2]]
  %v16 = vstv %s15
  %v17 = vrcp.pop %v16
  %s18 = vtos %v17
  %v19 = vld [vmem:[%s1] sm:$0xff]
  %v20 = vld [vmem:[%s1 + $0x8] sm:$0xff]
  %v21 = vstv %s18
  %v22 = vmul.f32 %v19, %v21
  %v23 = vmul.f32 %v20, %v21
  %v24 = vmax.f32 %v22, %v23
  %25 = vmax.xlane.f32.xlu0 %v24
  %v26 = vpop.xlane.xlu0 %25
  %v27 = vsub.f32 %v22, %v26
  %v28 = vsub.f32 %v23, %v26
  %v29 = vmul.f32 %v27, 1.442695
  %v30 = vpow.pop %v29
  %v31 = vmul.f32 %v28, 1.442695
  %v32 = vpow.pop %v31
  %v33 = vld [vmem:[%s2] sm:$0xff]
  %v34 = vld [vmem:[%s2 + $0x8] sm:$0xff]
  %v35 = vld [vmem:[%s2 + $0x10] sm:$0xff]
  %v36 = vld [vmem:[%s2 + $0x18] sm:$0xff]
  %v37 = vld [vmem:[%s2 + $0x20] sm:$0xff]
  %v38 = vld [vmem:[%s2 + $0x28] sm:$0xff]
  %v39 = vld [vmem:[%s2 + $0x30] sm:$0xff]
  %v40 = vld [vmem:[%s2 + $0x38] sm:$0xff]
  %v41 = vld [vmem:[%s2 + $0x40] sm:$0xff]
  %v42 = vld [vmem:[%s2 + $0x48] sm:$0xff]
  %v43 = vld [vmem:[%s2 + $0x50] sm:$0xff]
  %v44 = vld [vmem:[%s2 + $0x58] sm:$0xff]
  %v45 = vld [vmem:[%s2 + $0x60] sm:$0xff]
  %v46 = vld [vmem:[%s2 + $0x68] sm:$0xff]
  %v47 = vld [vmem:[%s2 + $0x70] sm:$0xff]
  %v48 = vld [vmem:[%s2 + $0x78] sm:$0xff]
  %v49 = vld [vmem:[%s2 + $0x80] sm:$0xff]
  %v50 = vld [vmem:[%s2 + $0x88] sm:$0xff]
  %v51 = vld [vmem:[%s2 + $0x90] sm:$0xff]
  %v52 = vld [vmem:[%s2 + $0x98] sm:$0xff]
  %v53 = vld [vmem:[%s2 + $0xa0] sm:$0xff]
  %v54 = vld [vmem:[%s2 + $0xa8] sm:$0xff]
  %v55 = vld [vmem:[%s2 + $0xb0] sm:$0xff]
  %v56 = vld [vmem:[%s2 + $0xb8] sm:$0xff]
  %v57 = vld [vmem:[%s2 + $0xc0] sm:$0xff]
  %v58 = vld [vmem:[%s2 + $0xc8] sm:$0xff]
  %v59 = vld [vmem:[%s2 + $0xd0] sm:$0xff]
  %v60 = vld [vmem:[%s2 + $0xd8] sm:$0xff]
  %v61 = vld [vmem:[%s2 + $0xe0] sm:$0xff]
  %v62 = vld [vmem:[%s2 + $0xe8] sm:$0xff]
  %v63 = vld [vmem:[%s2 + $0xf0] sm:$0xff]
  %v64 = vld [vmem:[%s2 + $0xf8] sm:$0xff]
  %65 = vmatprep.subr.mxu0 0.0
  %66 = vmatpush1.msra.mxu0 %v48
  %67 = vmatprep.subr.mxu0 0.0
  %68 = vmatpush1.msra.mxu0 %v47
  %69 = vmatprep.subr.mxu0 0.0
  %70 = vmatpush1.msra.mxu0 %v46
  %71 = vmatprep.subr.mxu0 0.0
  %72 = vmatpush1.msra.mxu0 %v45
  %73 = vmatprep.subr.mxu0 0.0
  %74 = vmatpush1.msra.mxu0 %v44
  %75 = vmatprep.subr.mxu0 0.0
  %76 = vmatpush1.msra.mxu0 %v43
  %77 = vmatprep.subr.mxu0 0.0
  %78 = vmatpush1.msra.mxu0 %v42
  %79 = vmatprep.subr.mxu0 0.0
  %80 = vmatpush1.msra.mxu0 %v41
  %81 = vmatprep.subr.mxu0 0.0
  %82 = vmatpush1.msra.mxu0 %v40
  %83 = vmatprep.subr.mxu0 0.0
  %84 = vmatpush1.msra.mxu0 %v39
  %85 = vmatprep.subr.mxu0 0.0
  %86 = vmatpush1.msra.mxu0 %v38
  %87 = vmatprep.subr.mxu0 0.0
  %88 = vmatpush1.msra.mxu0 %v37
  %89 = vmatprep.subr.mxu0 0.0
  %90 = vmatpush1.msra.mxu0 %v36
  %91 = vmatprep.subr.mxu0 0.0
  %92 = vmatpush1.msra.mxu0 %v35
  %93 = vmatprep.subr.mxu0 0.0
  %94 = vmatpush1.msra.mxu0 %v34
  %95 = vmatprep.subr.mxu0 0.0
  %96 = vmatpush1.msra.mxu0 %v33
  %97 = vmatprep.subr.mxu0 0.0
  %98 = vmatpush2.msra.mxu0 %v64
  %99 = vmatprep.subr.mxu0 0.0
  %100 = vmatpush2.msra.mxu0 %v63
  %101 = vmatprep.subr.mxu0 0.0
  %102 = vmatpush2.msra.mxu0 %v62
  %103 = vmatprep.subr.mxu0 0.0
  %104 = vmatpush2.msra.mxu0 %v61
  %105 = vmatprep.subr.mxu0 0.0
  %106 = vmatpush2.msra.mxu0 %v60
  %107 = vmatprep.subr.mxu0 0.0
  %108 = vmatpush2.msra.mxu0 %v59
  %109 = vmatprep.subr.mxu0 0.0
  %110 = vmatpush2.msra.mxu0 %v58
  %111 = vmatprep.subr.mxu0 0.0
  %112 = vmatpush2.msra.mxu0 %v57
  %113 = vmatprep.subr.mxu0 0.0
  %114 = vmatpush2.msra.mxu0 %v56
  %115 = vmatprep.subr.mxu0 0.0
  %116 = vmatpush2.msra.mxu0 %v55
  %117 = vmatprep.subr.mxu0 0.0
  %118 = vmatpush2.msra.mxu0 %v54
  %119 = vmatprep.subr.mxu0 0.0
  %120 = vmatpush2.msra.mxu0 %v53
  %121 = vmatprep.subr.mxu0 0.0
  %122 = vmatpush2.msra.mxu0 %v52
  %123 = vmatprep.subr.mxu0 0.0
  %124 = vmatpush2.msra.mxu0 %v51
  %125 = vmatprep.subr.mxu0 0.0
  %126 = vmatpush2.msra.mxu0 %v50
  %127 = vmatprep.subr.mxu0 0.0
  %128 = vmatpush2.msra.mxu0 %v49
  %129 = vmatprep.mubr.f32.mxu0 %v32
  %130 = vmatmul.mubr.f32.gmra.mxu0 %v30
  %v131 = vpop.f32.mrf.mxu0
  %v132 = vadd.f32 0.0, %v131
  %v133 = vpop.f32.mrf.mxu0
  %134 = vdwg.mxu0
  %v135 = vrcp.pop %v132
  %137 = vset.pattern.permute.xlu0 2
  %138 = vperm.xlu0 %137, %v135
  %v139 = vpop.permute.xlu0 %138
  %v141 = vmul.f32 %v132, %v139
  %vm142 = vcmask 15360
  %143 = vst.msk [vmem:[%s3] sm:$0xff] %vm142, %v141
  // Predicated region
  $region14: #{spatial_soft_argmax.1} parent=0 // pred_check
    _
  $region15: #{spatial_soft_argmax.1} parent=0 // pred_check_branch
    %145 = sbr.rel (0) target = $region17
  $region16: #{spatial_soft_argmax.1} parent=0 // pred_region
    _
  $region17: #{spatial_soft_argmax.1} parent=0 // pred_fallthru
    _
  // Predicated region
  $region18: #{spatial_soft_argmax.1} parent=0 // pred_check
    _
  $region19: #{spatial_soft_argmax.1} parent=0 // pred_check_branch
    %147 = sbr.rel (0) target = $region21
  $region20: #{spatial_soft_argmax.1} parent=0 // pred_region
    _
  $region21: #{spatial_soft_argmax.1} parent=0 // pred_fallthru
    _

</llo_original>
